<compile_context>
chip_gen: v5e
topology: v5e:2x2
jax: 0.10.0
libtpu: 0.0.40
codegen_flags: <defaults>
</compile_context>

<pallas_src>
import functools

import jax
import jax.numpy as jnp
from jax.experimental import pallas as pl
from jax.experimental.pallas import tpu as pltpu

_LANE = 128
_BN_CAP = 8                      # static unroll cap (samples per grid step)
_TARGET_STEP_BYTES = 1 << 20     # aim for ~1 MiB of activation DMA per step


def _detect_vmem_cap():
    """Per-generation usable-VMEM cap for vmem_limit_bytes (conservative)."""
    phys = None
    try:
        info = pltpu.get_tpu_info()
        for name in ("vmem_capacity_bytes", "vmem_size_bytes", "vmem_bytes"):
            v = getattr(info, name, None)
            if v:
                phys = int(v)
                break
    except Exception:
        phys = None
    if phys is None:
        phys = 64 << 20                        # safe fallback (v7x-sized)
    if phys >= (96 << 20):                     # v5e / v6e: 128 MiB physical
        return min(phys - (16 << 20), 100 << 20)
    return min(max(phys * 3 // 4, 8 << 20), 48 << 20)   # v7x: 64 MiB physical


_VMEM_CAP = _detect_vmem_cap()


def _round_up(a, b):
    return (a + b - 1) // b * b


def _largest_divisor_leq(n, cap):
    cap = max(1, min(n, cap))
    for d in range(cap, 0, -1):
        if n % d == 0:
            return d
    return 1


def _choose_tiles(N, F, H, S, T, x_bytes, out_bytes, vmem_cap):
    """Pick (samples-per-step BN, time tile TT, padded T) for the grid."""
    T128 = _round_up(max(int(T), 1), _LANE)
    m = T128 // _LANE

    # Time tile: largest divisor of the 128-aligned length, capped so one
    # sample's slab stays <= the DMA target and <= 8192 lanes.
    col_bytes = F * _LANE * x_bytes
    tt_cap_tiles = max(1, min(64, _TARGET_STEP_BYTES // max(col_bytes, 1)))
    tt_tiles = _largest_divisor_leq(m, tt_cap_tiles)
    tt = tt_tiles * _LANE

    # Samples per step: batch enough to reach the DMA target (unroll-capped).
    per_sample = F * tt * x_bytes
    want_bn = max(1, _TARGET_STEP_BYTES // max(per_sample, 1))
    bn = _largest_divisor_leq(N, min(N, _BN_CAP, want_bn))

    # VMEM safety: double-buffered x/out tiles + f32 intermediates <= ~cap/2.
    def est(bn_, tt_):
        return (2 * bn_ * F * tt_ * x_bytes
                + 2 * bn_ * S * tt_ * out_bytes
                + bn_ * (H + 2 * S) * tt_ * 4)

    while est(bn, tt) > vmem_cap // 2 and bn > 1:
        bn = _largest_divisor_leq(N, max(1, bn // 2))
    while est(bn, tt) > vmem_cap // 2 and tt_tiles > 1:
        tt_tiles = _largest_divisor_leq(m, max(1, tt_tiles // 2))
        tt = tt_tiles * _LANE

    # Keep >= 2 grid steps when possible (v7x has 2 TensorCores).
    def steps(bn_, tt_):
        return (N // bn_) * (T128 // tt_)

    if steps(bn, tt) < 2:
        if N > 1 and bn == N:
            bn = _largest_divisor_leq(N, max(1, N // 2))
        if steps(bn, tt) < 2 and tt_tiles > 1:
            tt_tiles = _largest_divisor_leq(m, max(1, tt_tiles // 2))
            tt = tt_tiles * _LANE

    return bn, tt, T128


def _mlp_kernel(x_ref, w1t_ref, b1_ref, w2t_ref, b2_ref, out_ref, *, act, bn):
    # x_ref:   (BN, F, TT)  -- BN samples, time on the lane axis
    # w1t_ref: (H, F), b1_ref: (H, 1)   (biases stay f32)
    # w2t_ref: (S, H), b2_ref: (S, 1)
    # out_ref: (BN, S, TT)  -- lane-dense stores (TT is a multiple of 128)
    w1t = w1t_ref[...]
    b1 = b1_ref[...]
    w2t = w2t_ref[...]
    b2 = b2_ref[...]

    for i in range(bn):                       # static unroll over sub-batch
        x = x_ref[i]                          # (F, TT)
        # hidden layer + ReLU: MXU matmul with f32 accumulation
        h = jnp.dot(w1t, x, preferred_element_type=jnp.float32) + b1
        h = jnp.maximum(h, 0.0)
        # output layer -> logits (states on sublanes, time on lanes)
        logits = jnp.dot(w2t, h.astype(w2t.dtype),
                         preferred_element_type=jnp.float32) + b2

        if act == "softmax":
            m = jnp.max(logits, axis=0, keepdims=True)
            e = jnp.exp(logits - m)
            inv = pl.reciprocal(jnp.sum(e, axis=0, keepdims=True))  # exact, EUP
            out = e * inv
        elif act == "sigmoid":
            out = jax.nn.sigmoid(logits)
        else:                                  # logits only (forward)
            out = logits

        out_ref[i] = out.astype(out_ref.dtype)


@functools.partial(
    jax.jit, static_argnames=("act", "out_dtype", "single_buffer_weights"))
def _mlp_time_major(x, w1t, b1, w2t, b2, *, act, out_dtype,
                    single_buffer_weights):
    """x: (N, F, T) -> (N, S, T) in out_dtype (logits or activated)."""
    N, F, T = x.shape
    H = w1t.shape[0]
    S = w2t.shape[0]

    x_bytes = jnp.dtype(x.dtype).itemsize
    w_bytes = jnp.dtype(w1t.dtype).itemsize
    out_bytes = jnp.dtype(out_dtype).itemsize

    bn, tt, T128 = _choose_tiles(N, F, H, S, T, x_bytes, out_bytes, _VMEM_CAP)
    if T128 != T:
        x = jnp.pad(x, ((0, 0), (0, 0), (0, T128 - T)))

    grid = (N // bn, T128 // tt)

    param_bufs = 1 if single_buffer_weights else 2
    vmem_est = (2 * bn * F * tt * x_bytes            # double-buffered x tiles
                + 2 * bn * S * tt * out_bytes        # double-buffered out tiles
                + bn * (H + 2 * S) * tt * 4          # f32 intermediates
                + param_bufs * ((H * F + S * H) * w_bytes + (H + S) * 4))
    vmem_limit = int(min(_VMEM_CAP, max(4 << 20, 2 * vmem_est)))

    cost = pl.CostEstimate(
        flops=2 * N * T128 * (F * H + H * S),
        transcendentals=(N * T128 * S) if act in ("softmax", "sigmoid") else 0,
        bytes_accessed=(N * F * T128 * x_bytes
                        + (F * H + H * S) * w_bytes + (H + S) * 4
                        + N * S * T128 * out_bytes),
    )

    def param_spec(shape):
        if single_buffer_weights:
            # constant block index -> no need to double-buffer the weights
            return pl.BlockSpec(shape, lambda n, t: (0, 0),
                                pipeline_mode=pl.Buffered(1))
        return pl.BlockSpec(shape, lambda n, t: (0, 0))

    out = pl.pallas_call(
        functools.partial(_mlp_kernel, act=act, bn=bn),
        out_shape=jax.ShapeDtypeStruct((N, S, T128), out_dtype),
        grid_spec=pltpu.PrefetchScalarGridSpec(
            num_scalar_prefetch=0,
            grid=grid,
            in_specs=[
                pl.BlockSpec((bn, F, tt), lambda n, t: (n, 0, t)),
                param_spec((H, F)),
                param_spec((H, 1)),
                param_spec((S, H)),
                param_spec((S, 1)),
            ],
            out_specs=pl.BlockSpec((bn, S, tt), lambda n, t: (n, 0, t)),
        ),
        compiler_params=pltpu.CompilerParams(
            dimension_semantics=("parallel", "parallel"),
            vmem_limit_bytes=vmem_limit,
        ),
        cost_estimate=cost,
    )(x, w1t, b1, w2t, b2)

    if T128 != T:
        out = out[:, :, :T]
    return out


# Single-buffered weights are the fast path; fall back to default buffering if
# this JAX build rejects pl.Buffered(1).
_SINGLE_BUFFER_OK = None


def _mlp_apply(x, w1t, b1, w2t, b2, *, act, out_dtype):
    global _SINGLE_BUFFER_OK
    if _SINGLE_BUFFER_OK is None:
        try:
            out = _mlp_time_major(x, w1t, b1, w2t, b2, act=act,
                                  out_dtype=out_dtype,
                                  single_buffer_weights=True)
            jax.block_until_ready(out)
            _SINGLE_BUFFER_OK = True
            return out
        except Exception:
            _SINGLE_BUFFER_OK = False
    return _mlp_time_major(x, w1t, b1, w2t, b2, act=act, out_dtype=out_dtype,
                           single_buffer_weights=_SINGLE_BUFFER_OK)


class PallasTorchModel:
    """JAX/Pallas port of TorchModel (per-timestep MLP: F -> hidden -> S).

    forward(x, return_all): logits; (N, S, T) if return_all else (N, S).
    predict(x, return_all): forward + Softmax(dim=1) (S > 1) / Sigmoid, fused
    into the kernel (single pass, bf16 writeback).
    """

    def __init__(self, feature_size, num_states, hidden_size, key,
                 compute_dtype=jnp.bfloat16, logits_dtype=jnp.float32,
                 probs_dtype=jnp.bfloat16):
        self.feature_size = feature_size
        self.num_states = num_states
        self.hidden_size = hidden_size
        self.compute_dtype = compute_dtype      # bf16 halves the dominant HBM read
        self.logits_dtype = logits_dtype
        self.probs_dtype = probs_dtype

        k1, k2, k3, k4 = jax.random.split(key, 4)
        # parameters stored pre-transposed for the time-major kernel:
        #   w1t: (H, F), b1: (H, 1), w2t: (S, H), b2: (S, 1)
        self.w1t = (jax.random.normal(k1, (hidden_size, feature_size),
                                      jnp.float32)
                    / jnp.sqrt(feature_size)).astype(compute_dtype)
        self.b1 = 0.01 * jax.random.normal(k2, (hidden_size, 1), jnp.float32)
        self.w2t = (jax.random.normal(k3, (num_states, hidden_size),
                                      jnp.float32)
                    / jnp.sqrt(hidden_size)).astype(compute_dtype)
        self.b2 = 0.01 * jax.random.normal(k4, (num_states, 1), jnp.float32)

    def _call(self, x, act, out_dtype):
        N, F, T = x.shape
        assert F == self.feature_size
        if x.dtype != self.compute_dtype:
            # prefer producing x in compute_dtype upstream (avoids this pass)
            x = x.astype(self.compute_dtype)
        return _mlp_apply(x, self.w1t, self.b1, self.w2t, self.b2,
                          act=act, out_dtype=out_dtype)

    def forward(self, x, return_all=True):
        if return_all:
            return self._call(x, None, self.logits_dtype)
        # last-timestep only: slice BEFORE the kernel (T/128-fold less work)
        return self._call(x[:, :, -1:], None, self.logits_dtype)[:, :, 0]

    def predict(self, x, return_all=True):
        act = "softmax" if self.num_states > 1 else "sigmoid"
        if return_all:
            return self._call(x, act, self.probs_dtype)
        return self._call(x[:, :, -1:], act, self.probs_dtype)[:, :, 0]


if __name__ == "__main__":
    key = jax.random.PRNGKey(0)
    k_param, k_param1, k_x = jax.random.split(key, 3)

    num_samples, feature_size, num_times = 2, 4, 16
    num_states, hidden_size = 3, 32

    model = PallasTorchModel(feature_size, num_states, hidden_size, k_param)
    x_f32 = jax.random.normal(
        k_x, (num_samples, feature_size, num_times), jnp.float32)
    # cast where the data is produced (single pass), per the memory roofline
    x = x_f32.astype(model.compute_dtype)

    out_all = model.forward(x, return_all=True)        # (2, 3, 16) logits f32
    out_last = model.forward(x, return_all=False)      # (2, 3)     logits f32
    pred_all = model.predict(x, return_all=True)       # (2, 3, 16) softmax bf16
    pred_last = model.predict(x, return_all=False)     # (2, 3)

    # binary-state model: sigmoid fused into the same kernel (single pass)
    model1 = PallasTorchModel(feature_size, 1, hidden_size, k_param1)
    pred_bin = model1.predict(x, return_all=True)      # (2, 1, 16)

    jax.block_until_ready((out_all, out_last, pred_all, pred_last, pred_bin))

    # shape checks
    assert out_all.shape == (num_samples, num_states, num_times)
    assert out_last.shape == (num_samples, num_states)
    assert pred_all.shape == (num_samples, num_states, num_times)
    assert pred_last.shape == (num_samples, num_states)
    assert pred_bin.shape == (num_samples, 1, num_times)

    # numerical checks vs a pure-JAX f32 reference built from the same
    # (bf16-rounded) weights and inputs; tolerances widened for bf16 compute.
    x_ref = x.astype(jnp.float32)

    def ref_logits(m):
        rows = jnp.transpose(x_ref, (0, 2, 1)).reshape(-1, feature_size)
        h = jnp.maximum(rows @ m.w1t.astype(jnp.float32).T + m.b1[:, 0], 0.0)
        r = h @ m.w2t.astype(jnp.float32).T + m.b2[:, 0]
        return jnp.transpose(
            r.reshape(num_samples, num_times, -1), (0, 2, 1))

    ref = ref_logits(model)
    pred_all_f = pred_all.astype(jnp.float32)
    assert jnp.allclose(jnp.sum(pred_all_f, axis=1), 1.0, atol=2e-2)
    assert jnp.allclose(out_all, ref, atol=3e-2, rtol=3e-2)
    assert jnp.allclose(out_last, ref[:, :, -1], atol=3e-2, rtol=3e-2)
    assert jnp.allclose(pred_all_f, jax.nn.softmax(ref, axis=1), atol=3e-2)
    assert jnp.allclose(pred_last.astype(jnp.float32),
                        jax.nn.softmax(ref[:, :, -1], axis=-1), atol=3e-2)
    ref1 = ref_logits(model1)
    assert jnp.allclose(pred_bin.astype(jnp.float32),
                        jax.nn.sigmoid(ref1), atol=3e-2)

    print("KERNEL_OK")
</pallas_src>

<mosaic_0001>
module attributes {stable_mosaic.version = 11 : i64} {
  func.func @_mlp_kernel(%arg0: i32, %arg1: i32, %arg2: memref<1x4x128xbf16, #tpu.memory_space<vmem>>, %arg3: memref<32x4xbf16, #tpu.memory_space<vmem>>, %arg4: memref<32x1xf32, #tpu.memory_space<vmem>>, %arg5: memref<3x32xbf16, #tpu.memory_space<vmem>>, %arg6: memref<3x1xf32, #tpu.memory_space<vmem>>, %arg7: memref<1x3x128xf32, #tpu.memory_space<vmem>>) attributes {dimension_semantics = [#tpu.dimension_semantics<parallel>, #tpu.dimension_semantics<parallel>], iteration_bounds = array<i64: 2, 1>, scalar_prefetch = 0 : i64, scratch_operands = 0 : i64, tpu.core_type = #tpu.core_type<tc>, window_params = [{transform_indices = @transform_0, window_bounds = array<i64: 1, 4, 128>}, {pipeline_mode = #tpu.pipeline_mode<synchronous>, transform_indices = @transform_1, window_bounds = array<i64: 32, 4>}, {pipeline_mode = #tpu.pipeline_mode<synchronous>, transform_indices = @transform_2, window_bounds = array<i64: 32, 1>}, {pipeline_mode = #tpu.pipeline_mode<synchronous>, transform_indices = @transform_3, window_bounds = array<i64: 3, 32>}, {pipeline_mode = #tpu.pipeline_mode<synchronous>, transform_indices = @transform_4, window_bounds = array<i64: 3, 1>}, {transform_indices = @transform_5, window_bounds = array<i64: 1, 3, 128>}]} {
    %c0 = arith.constant 0 : index
    %c0_0 = arith.constant 0 : index
    %0 = vector.load %arg3[%c0, %c0_0] : memref<32x4xbf16, #tpu.memory_space<vmem>>, vector<32x4xbf16>
    %c0_1 = arith.constant 0 : index
    %c0_2 = arith.constant 0 : index
    %1 = vector.load %arg4[%c0_1, %c0_2] : memref<32x1xf32, #tpu.memory_space<vmem>>, vector<32x1xf32>
    %c0_3 = arith.constant 0 : index
    %c0_4 = arith.constant 0 : index
    %2 = vector.load %arg5[%c0_3, %c0_4] : memref<3x32xbf16, #tpu.memory_space<vmem>>, vector<3x32xbf16>
    %c0_5 = arith.constant 0 : index
    %c0_6 = arith.constant 0 : index
    %3 = vector.load %arg6[%c0_5, %c0_6] : memref<3x1xf32, #tpu.memory_space<vmem>>, vector<3x1xf32>
    %c0_7 = arith.constant 0 : index
    %c0_8 = arith.constant 0 : index
    %c0_9 = arith.constant 0 : index
    %4 = vector.load %arg2[%c0_7, %c0_8, %c0_9] : memref<1x4x128xbf16, #tpu.memory_space<vmem>>, vector<1x4x128xbf16>
    %5 = vector.shape_cast %4 : vector<1x4x128xbf16> to vector<4x128xbf16>
    %cst = arith.constant dense<0.000000e+00> : vector<32x128xf32>
    %6 = tpu.matmul %0, %5, %cst {dimension_numbers = #tpu.dot_dimension_numbers<[1], [0], [0], [1], [0, 0, 1, 1], [], []>} : vector<32x4xbf16>, vector<4x128xbf16>, vector<32x128xf32> -> vector<32x128xf32>
    %7 = vector.broadcast %1 : vector<32x1xf32> to vector<32x128xf32>
    %8 = arith.addf %6, %7 : vector<32x128xf32>
    %cst_10 = arith.constant 0.000000e+00 : f32
    %9 = vector.broadcast %cst_10 : f32 to vector<32x128xf32>
    %10 = arith.maximumf %8, %9 : vector<32x128xf32>
    %11 = arith.truncf %10 : vector<32x128xf32> to vector<32x128xbf16>
    %cst_11 = arith.constant dense<0.000000e+00> : vector<3x128xf32>
    %12 = tpu.matmul %2, %11, %cst_11 {dimension_numbers = #tpu.dot_dimension_numbers<[1], [0], [0], [1], [0, 0, 1, 1], [], []>} : vector<3x32xbf16>, vector<32x128xbf16>, vector<3x128xf32> -> vector<3x128xf32>
    %13 = vector.broadcast %3 : vector<3x1xf32> to vector<3x128xf32>
    %14 = arith.addf %12, %13 : vector<3x128xf32>
    %c0_12 = arith.constant 0 : index
    %c0_13 = arith.constant 0 : index
    %c0_14 = arith.constant 0 : index
    %15 = vector.load %arg7[%c0_12, %c0_13, %c0_14] : memref<1x3x128xf32, #tpu.memory_space<vmem>>, vector<1x3x128xf32>
    %16 = vector.shape_cast %15 : vector<1x3x128xf32> to vector<3x128xf32>
    %17 = vector.shape_cast %14 : vector<3x128xf32> to vector<1x3x128xf32>
    tpu.vector_store %arg7[%c0_12, %c0_13, %c0_14], %17 {strides = array<i32>} : memref<1x3x128xf32, #tpu.memory_space<vmem>>, vector<1x3x128xf32>,
    return
  }
  func.func @transform_0(%arg0: i32, %arg1: i32) -> (i32, i32, i32) {
    %c0_i32 = arith.constant 0 : i32
    %c0_i32_0 = arith.constant 0 : i32
    return %arg0, %c0_i32, %arg1 : i32, i32, i32
  }
  func.func @transform_1(%arg0: i32, %arg1: i32) -> (i32, i32) {
    %c0_i32 = arith.constant 0 : i32
    %c0_i32_0 = arith.constant 0 : i32
    %c0_i32_1 = arith.constant 0 : i32
    return %c0_i32, %c0_i32_0 : i32, i32
  }
  func.func @transform_2(%arg0: i32, %arg1: i32) -> (i32, i32) {
    %c0_i32 = arith.constant 0 : i32
    %c0_i32_0 = arith.constant 0 : i32
    %c0_i32_1 = arith.constant 0 : i32
    return %c0_i32, %c0_i32_0 : i32, i32
  }
  func.func @transform_3(%arg0: i32, %arg1: i32) -> (i32, i32) {
    %c0_i32 = arith.constant 0 : i32
    %c0_i32_0 = arith.constant 0 : i32
    %c0_i32_1 = arith.constant 0 : i32
    return %c0_i32, %c0_i32_0 : i32, i32
  }
  func.func @transform_4(%arg0: i32, %arg1: i32) -> (i32, i32) {
    %c0_i32 = arith.constant 0 : i32
    %c0_i32_0 = arith.constant 0 : i32
    %c0_i32_1 = arith.constant 0 : i32
    return %c0_i32, %c0_i32_0 : i32, i32
  }
  func.func @transform_5(%arg0: i32, %arg1: i32) -> (i32, i32, i32) {
    %c0_i32 = arith.constant 0 : i32
    %c0_i32_0 = arith.constant 0 : i32
    return %arg0, %c0_i32, %arg1 : i32, i32, i32
  }
}

module attributes {stable_mosaic.version = 11 : i64} {
  func.func @_mlp_kernel(%arg0: i32, %arg1: i32, %arg2: memref<1x4x128xbf16, #tpu.memory_space<vmem>>, %arg3: memref<32x4xbf16, #tpu.memory_space<vmem>>, %arg4: memref<32x1xf32, #tpu.memory_space<vmem>>, %arg5: memref<3x32xbf16, #tpu.memory_space<vmem>>, %arg6: memref<3x1xf32, #tpu.memory_space<vmem>>, %arg7: memref<1x3x128xf32, #tpu.memory_space<vmem>>) attributes {dimension_semantics = [#tpu.dimension_semantics<parallel>, #tpu.dimension_semantics<parallel>], iteration_bounds = array<i64: 2, 1>, scalar_prefetch = 0 : i64, scratch_operands = 0 : i64, tpu.core_type = #tpu.core_type<tc>, window_params = [{transform_indices = @transform_0, window_bounds = array<i64: 1, 4, 128>}, {pipeline_mode = #tpu.pipeline_mode<synchronous>, transform_indices = @transform_1, window_bounds = array<i64: 32, 4>}, {pipeline_mode = #tpu.pipeline_mode<synchronous>, transform_indices = @transform_2, window_bounds = array<i64: 32, 1>}, {pipeline_mode = #tpu.pipeline_mode<synchronous>, transform_indices = @transform_3, window_bounds = array<i64: 3, 32>}, {pipeline_mode = #tpu.pipeline_mode<synchronous>, transform_indices = @transform_4, window_bounds = array<i64: 3, 1>}, {transform_indices = @transform_5, window_bounds = array<i64: 1, 3, 128>}]} {
    %c0 = arith.constant 0 : index
    %c0_0 = arith.constant 0 : index
    %0 = vector.load %arg3[%c0, %c0_0] : memref<32x4xbf16, #tpu.memory_space<vmem>>, vector<32x4xbf16>
    %c0_1 = arith.constant 0 : index
    %c0_2 = arith.constant 0 : index
    %1 = vector.load %arg4[%c0_1, %c0_2] : memref<32x1xf32, #tpu.memory_space<vmem>>, vector<32x1xf32>
    %c0_3 = arith.constant 0 : index
    %c0_4 = arith.constant 0 : index
    %2 = vector.load %arg5[%c0_3, %c0_4] : memref<3x32xbf16, #tpu.memory_space<vmem>>, vector<3x32xbf16>
    %c0_5 = arith.constant 0 : index
    %c0_6 = arith.constant 0 : index
    %3 = vector.load %arg6[%c0_5, %c0_6] : memref<3x1xf32, #tpu.memory_space<vmem>>, vector<3x1xf32>
    %c0_7 = arith.constant 0 : index
    %c0_8 = arith.constant 0 : index
    %c0_9 = arith.constant 0 : index
    %4 = vector.load %arg2[%c0_7, %c0_8, %c0_9] : memref<1x4x128xbf16, #tpu.memory_space<vmem>>, vector<1x4x128xbf16>
    %5 = vector.shape_cast %4 : vector<1x4x128xbf16> to vector<4x128xbf16>
    %cst = arith.constant dense<0.000000e+00> : vector<32x128xf32>
    %6 = tpu.matmul %0, %5, %cst {dimension_numbers = #tpu.dot_dimension_numbers<[1], [0], [0], [1], [0, 0, 1, 1], [], []>} : vector<32x4xbf16>, vector<4x128xbf16>, vector<32x128xf32> -> vector<32x128xf32>
    %7 = vector.broadcast %1 : vector<32x1xf32> to vector<32x128xf32>
    %8 = arith.addf %6, %7 : vector<32x128xf32>
    %cst_10 = arith.constant 0.000000e+00 : f32
    %9 = vector.broadcast %cst_10 : f32 to vector<32x128xf32>
    %10 = arith.maximumf %8, %9 : vector<32x128xf32>
    %11 = arith.truncf %10 : vector<32x128xf32> to vector<32x128xbf16>
    %cst_11 = arith.constant dense<0.000000e+00> : vector<3x128xf32>
    %12 = tpu.matmul %2, %11, %cst_11 {dimension_numbers = #tpu.dot_dimension_numbers<[1], [0], [0], [1], [0, 0, 1, 1], [], []>} : vector<3x32xbf16>, vector<32x128xbf16>, vector<3x128xf32> -> vector<3x128xf32>
    %13 = vector.broadcast %3 : vector<3x1xf32> to vector<3x128xf32>
    %14 = arith.addf %12, %13 : vector<3x128xf32>
    %c0_12 = arith.constant 0 : index
    %c0_13 = arith.constant 0 : index
    %c0_14 = arith.constant 0 : index
    %15 = vector.load %arg7[%c0_12, %c0_13, %c0_14] : memref<1x3x128xf32, #tpu.memory_space<vmem>>, vector<1x3x128xf32>
    %16 = vector.shape_cast %15 : vector<1x3x128xf32> to vector<3x128xf32>
    %17 = vector.shape_cast %14 : vector<3x128xf32> to vector<1x3x128xf32>
    tpu.vector_store %arg7[%c0_12, %c0_13, %c0_14], %17 {strides = array<i32>} : memref<1x3x128xf32, #tpu.memory_space<vmem>>, vector<1x3x128xf32>,
    return
  }
  func.func @transform_0(%arg0: i32, %arg1: i32) -> (i32, i32, i32) {
    %c0_i32 = arith.constant 0 : i32
    %c0_i32_0 = arith.constant 0 : i32
    return %arg0, %c0_i32, %arg1 : i32, i32, i32
  }
  func.func @transform_1(%arg0: i32, %arg1: i32) -> (i32, i32) {
    %c0_i32 = arith.constant 0 : i32
    %c0_i32_0 = arith.constant 0 : i32
    %c0_i32_1 = arith.constant 0 : i32
    return %c0_i32, %c0_i32_0 : i32, i32
  }
  func.func @transform_2(%arg0: i32, %arg1: i32) -> (i32, i32) {
    %c0_i32 = arith.constant 0 : i32
    %c0_i32_0 = arith.constant 0 : i32
    %c0_i32_1 = arith.constant 0 : i32
    return %c0_i32, %c0_i32_0 : i32, i32
  }
  func.func @transform_3(%arg0: i32, %arg1: i32) -> (i32, i32) {
    %c0_i32 = arith.constant 0 : i32
    %c0_i32_0 = arith.constant 0 : i32
    %c0_i32_1 = arith.constant 0 : i32
    return %c0_i32, %c0_i32_0 : i32, i32
  }
  func.func @transform_4(%arg0: i32, %arg1: i32) -> (i32, i32) {
    %c0_i32 = arith.constant 0 : i32
    %c0_i32_0 = arith.constant 0 : i32
    %c0_i32_1 = arith.constant 0 : i32
    return %c0_i32, %c0_i32_0 : i32, i32
  }
  func.func @transform_5(%arg0: i32, %arg1: i32) -> (i32, i32, i32) {
    %c0_i32 = arith.constant 0 : i32
    %c0_i32_0 = arith.constant 0 : i32
    return %arg0, %c0_i32, %arg1 : i32, i32, i32
  }
}

</mosaic_0001>

<llo_original>
// kernel: _mlp_time_major.1
$region0: #{_mlp_time_major.1}
  #allocation0 [shape = 'u32[]', space=smem, size = 0x4, offset = 0x4, fixed_abs, tag = 'smem constant byte address 0x4 - core index']
  #allocation1 [shape = 'u32[72,128]{1,0:T(1,128)}', space=vmem, size = 0x9000, scoped, tag = 'internal scratch']
  %s0 = inlined_call_operand.vmem [shape: bf16[2,4,128], index: 0, kind: input, shape index: {}]
  %s1 = inlined_call_operand.vmem [shape: bf16[32,4], index: 1, kind: input, shape index: {}]
  %s2 = inlined_call_operand.vmem [shape: f32[32,1], index: 2, kind: input, shape index: {}]
  %s3 = inlined_call_operand.vmem [shape: bf16[3,32], index: 3, kind: input, shape index: {}]
  %s4 = inlined_call_operand.vmem [shape: f32[3,1], index: 4, kind: input, shape index: {}]
  %s5 = inlined_call_operand.vmem [shape: f32[2,3,128], index: 5, kind: output, shape index: {}]
  %s6 = sld [smem:[#allocation0]]
  $region53: #{_mlp_time_major.1} parent=0
    _
  %s8 = ssub.s32 1, %s6
  %s9 = scalar_select 0, %s8, %s6
  loop: start=0, step=1, limit=4
  $region2: #{_mlp_time_major.1} parent=0 // loop_pre_header
    _
  $region3: #{_mlp_time_major.1} parent=0 // loop_header
    %s11 = sphi 0, %s15
    %p12 = scmp.ge.s32.totalorder %s11, 4
    %s18 = sphi 0, %s30
    %s19 = sphi 0, %s26
    %s20 = sphi 0, %s18
    %s21 = sphi 0, %s19
    %s22 = sphi 0, %s20
    %s23 = sphi 0, %s21
    %s35 = sphi 0, %s37
    %s38 = sphi 0, %s35
    %s39 = sphi 0, %s38
    %s55 = sphi 0, %s39
    %s59 = sphi 0, %s59
    %s61 = sphi 0, %s59
    %s62 = sphi 0, %s61
    %s76 = sphi 0, %s62
    %s80 = sphi 0, %s80
    %s82 = sphi 0, %s80
    %s83 = sphi 0, %s82
    %s97 = sphi 0, %s83
    %s101 = sphi 0, %s101
    %s103 = sphi 0, %s101
    %s104 = sphi 0, %s103
    %s118 = sphi 0, %s104
    %s122 = sphi 0, %s122
    %s124 = sphi 0, %s122
    %s125 = sphi 0, %s124
    %s139 = sphi 0, %s125
    %s147 = sphi 0, %s149
    %s150 = sphi 0, %s147
    %s151 = sphi 0, %s150
    %s167 = sphi 0, %s151
  $region4: #{_mlp_time_major.1} parent=0 // loop_header_branch
    %14 = sbr.rel (%p12) target = $region8
  $region5: #{_mlp_time_major.1} parent=0 // loop_body
    %s16 = ssub.s32 %s11, 1
    %s17 = ssub.s32 %s11, 2
    %s24 = sadd.s32 1, %s19
    %p25 = scmp.ge.s32.totalorder %s24, 1
    %s26 = scalar_select %p25, 0, %s24
    %s27 = sadd.s32 1, %s18
    %s28 = scalar_select %p25, %s27, %s18
    %p29 = scmp.ge.s32.totalorder %s28, 2
    %s30 = scalar_select %p29, 0, %s28
    %s31 = ssub.s32 %s18, %s30
    %s32 = ssub.s32 %s19, %s26
    %s33 = sor.u32 %s31, %s32
    %p34 = scmp.eq.s32.totalorder %s33, 0
    %s36 = sadd.s32 %s35, 1
    %s37 = scalar_select %p34, %s35, %s36
    %p40 = pneg %p34
    %p41 = scmp.eq.s32.totalorder %s11, 1
    %p42 = por %p40, %p41
    %p43 = scmp.ne.s32.totalorder %s35, %s38
    %p44 = scmp.eq.s32.totalorder %s11, 0
    %p45 = por %p43, %p44
    %p46 = scmp.ne.s32.totalorder %s35, %s38
    %p47 = scmp.eq.s32.totalorder %s16, 1
    %p48 = por %p46, %p47
    %p49 = scmp.ne.s32.totalorder %s38, %s39
    %p50 = scmp.eq.s32.totalorder %s16, 0
    %p51 = por %p49, %p50
    %p52 = scmp.ne.s32.totalorder %s38, %s39
    %p53 = scmp.eq.s32.totalorder %s17, 1
    %p54 = por %p52, %p53
    %p56 = scmp.ne.s32.totalorder %s39, %s55
    %p57 = scmp.eq.s32.totalorder %s17, 0
    %p58 = por %p56, %p57
    %s60 = sadd.s32 %s59, 1
    %p63 = scmp.eq.s32.totalorder %s11, 1
    %p64 = scmp.ne.s32.totalorder %s59, %s61
    %p65 = scmp.eq.s32.totalorder %s11, 0
    %p66 = por %p64, %p65
    %p67 = scmp.ne.s32.totalorder %s59, %s61
    %p68 = scmp.eq.s32.totalorder %s16, 1
    %p69 = por %p67, %p68
    %p70 = scmp.ne.s32.totalorder %s61, %s62
    %p71 = scmp.eq.s32.totalorder %s16, 0
    %p72 = por %p70, %p71
    %p73 = scmp.ne.s32.totalorder %s61, %s62
    %p74 = scmp.eq.s32.totalorder %s17, 1
    %p75 = por %p73, %p74
    %p77 = scmp.ne.s32.totalorder %s62, %s76
    %p78 = scmp.eq.s32.totalorder %s17, 0
    %p79 = por %p77, %p78
    %s81 = sadd.s32 %s80, 1
    %p84 = scmp.eq.s32.totalorder %s11, 1
    %p85 = scmp.ne.s32.totalorder %s80, %s82
    %p86 = scmp.eq.s32.totalorder %s11, 0
    %p87 = por %p85, %p86
    %p88 = scmp.ne.s32.totalorder %s80, %s82
    %p89 = scmp.eq.s32.totalorder %s16, 1
    %p90 = por %p88, %p89
    %p91 = scmp.ne.s32.totalorder %s82, %s83
    %p92 = scmp.eq.s32.totalorder %s16, 0
    %p93 = por %p91, %p92
    %p94 = scmp.ne.s32.totalorder %s82, %s83
    %p95 = scmp.eq.s32.totalorder %s17, 1
    %p96 = por %p94, %p95
    %p98 = scmp.ne.s32.totalorder %s83, %s97
    %p99 = scmp.eq.s32.totalorder %s17, 0
    %p100 = por %p98, %p99
    %s102 = sadd.s32 %s101, 1
    %p105 = scmp.eq.s32.totalorder %s11, 1
    %p106 = scmp.ne.s32.totalorder %s101, %s103
    %p107 = scmp.eq.s32.totalorder %s11, 0
    %p108 = por %p106, %p107
    %p109 = scmp.ne.s32.totalorder %s101, %s103
    %p110 = scmp.eq.s32.totalorder %s16, 1
    %p111 = por %p109, %p110
    %p112 = scmp.ne.s32.totalorder %s103, %s104
    %p113 = scmp.eq.s32.totalorder %s16, 0
    %p114 = por %p112, %p113
    %p115 = scmp.ne.s32.totalorder %s103, %s104
    %p116 = scmp.eq.s32.totalorder %s17, 1
    %p117 = por %p115, %p116
    %p119 = scmp.ne.s32.totalorder %s104, %s118
    %p120 = scmp.eq.s32.totalorder %s17, 0
    %p121 = por %p119, %p120
    %s123 = sadd.s32 %s122, 1
    %p126 = scmp.eq.s32.totalorder %s11, 1
    %p127 = scmp.ne.s32.totalorder %s122, %s124
    %p128 = scmp.eq.s32.totalorder %s11, 0
    %p129 = por %p127, %p128
    %p130 = scmp.ne.s32.totalorder %s122, %s124
    %p131 = scmp.eq.s32.totalorder %s16, 1
    %p132 = por %p130, %p131
    %p133 = scmp.ne.s32.totalorder %s124, %s125
    %p134 = scmp.eq.s32.totalorder %s16, 0
    %p135 = por %p133, %p134
    %p136 = scmp.ne.s32.totalorder %s124, %s125
    %p137 = scmp.eq.s32.totalorder %s17, 1
    %p138 = por %p136, %p137
    %p140 = scmp.ne.s32.totalorder %s125, %s139
    %p141 = scmp.eq.s32.totalorder %s17, 0
    %p142 = por %p140, %p141
    %s143 = ssub.s32 %s18, %s30
    %s144 = ssub.s32 %s19, %s26
    %s145 = sor.u32 %s143, %s144
    %p146 = scmp.eq.s32.totalorder %s145, 0
    %s148 = sadd.s32 %s147, 1
    %s149 = scalar_select %p146, %s147, %s148
    %p152 = pneg %p146
    %p153 = scmp.eq.s32.totalorder %s11, 1
    %p154 = por %p152, %p153
    %p155 = scmp.ne.s32.totalorder %s147, %s150
    %p156 = scmp.eq.s32.totalorder %s11, 0
    %p157 = por %p155, %p156
    %p158 = scmp.ne.s32.totalorder %s147, %s150
    %p159 = scmp.eq.s32.totalorder %s16, 1
    %p160 = por %p158, %p159
    %p161 = scmp.ne.s32.totalorder %s150, %s151
    %p162 = scmp.eq.s32.totalorder %s16, 0
    %p163 = por %p161, %p162
    %p164 = scmp.ne.s32.totalorder %s150, %s151
    %p165 = scmp.eq.s32.totalorder %s17, 1
    %p166 = por %p164, %p165
    %p168 = scmp.ne.s32.totalorder %s151, %s167
    %p169 = scmp.eq.s32.totalorder %s17, 0
    %p170 = por %p168, %p169
    %p171 = scmp.le.s32.totalorder 1, %s11
    %p172 = scmp.lt.s32.totalorder %s11, 3
    %p173 = pnand %p171, %p172
    %p174 = pneg %p173
    // Predicated region
    $region9: #{_mlp_time_major.1} parent=5 // pred_check
      _
    $region10: #{_mlp_time_major.1} parent=5 // pred_check_branch
      %176 = sbr.rel (%p173) target = $region12
    $region11: #{_mlp_time_major.1} parent=5 // pred_region
      %s177 = ssub.s32 %s11, 1
      // Predicated region
      $region13: #{_mlp_time_major.1} parent=11 // pred_check
        %p178 = pneg %p72
      $region14: #{_mlp_time_major.1} parent=11 // pred_check_branch
        %180 = sbr.rel (%p178) target = $region16
      $region15: #{_mlp_time_major.1} parent=11 // pred_region
        _
      $region16: #{_mlp_time_major.1} parent=11 // pred_fallthru
        _
      // Predicated region
      $region17: #{_mlp_time_major.1} parent=11 // pred_check
        %p181 = pneg %p93
      $region18: #{_mlp_time_major.1} parent=11 // pred_check_branch
        %183 = sbr.rel (%p181) target = $region20
      $region19: #{_mlp_time_major.1} parent=11 // pred_region
        _
      $region20: #{_mlp_time_major.1} parent=11 // pred_fallthru
        _
      // Predicated region
      $region21: #{_mlp_time_major.1} parent=11 // pred_check
        %p184 = pneg %p114
      $region22: #{_mlp_time_major.1} parent=11 // pred_check_branch
        %186 = sbr.rel (%p184) target = $region24
      $region23: #{_mlp_time_major.1} parent=11 // pred_region
        _
      $region24: #{_mlp_time_major.1} parent=11 // pred_fallthru
        _
      // Predicated region
      $region25: #{_mlp_time_major.1} parent=11 // pred_check
        %p187 = pneg %p135
      $region26: #{_mlp_time_major.1} parent=11 // pred_check_branch
        %189 = sbr.rel (%p187) target = $region28
      $region27: #{_mlp_time_major.1} parent=11 // pred_region
        _
      $region28: #{_mlp_time_major.1} parent=11 // pred_fallthru
        _
    $region12: #{_mlp_time_major.1} parent=5 // pred_fallthru
      _
    %p190 = scmp.lt.s32.totalorder %s11, 2
    // Predicated region
    $region29: #{_mlp_time_major.1} parent=5 // pred_check
      %p191 = pneg %p190
    $region30: #{_mlp_time_major.1} parent=5 // pred_check_branch
      %193 = sbr.rel (%p191) target = $region32
    $region31: #{_mlp_time_major.1} parent=5 // pred_region
      // Predicated region
      $region33: #{_mlp_time_major.1} parent=31 // pred_check
        %p194 = pneg %p45
      $region34: #{_mlp_time_major.1} parent=31 // pred_check_branch
        %196 = sbr.rel (%p194) target = $region36
      $region35: #{_mlp_time_major.1} parent=31 // pred_region
        %p197 = scmp.lt.s32.totalorder %s18, 1
        %s198 = scalar_select %p197, %s18, 1
        %p199 = scmp.lt.s32.totalorder %s19, 0
        %s200 = scalar_select %p199, %s19, 0
        %s201 = sadd.s32 %s200, %s198
        %s202 = smul.addr %s201, 2
        %s203 = scalar_lea.vmem %s0, %s202
      $region36: #{_mlp_time_major.1} parent=31 // pred_fallthru
        _
    $region32: #{_mlp_time_major.1} parent=5 // pred_fallthru
      _
    %p204 = scmp.le.s32.totalorder 1, %s11
    %p205 = scmp.lt.s32.totalorder %s11, 3
    %p206 = pnand %p204, %p205
    %p207 = pneg %p206
    // Predicated region
    $region37: #{_mlp_time_major.1} parent=5 // pred_check
      _
    $region38: #{_mlp_time_major.1} parent=5 // pred_check_branch
      %209 = sbr.rel (%p206) target = $region40
    $region39: #{_mlp_time_major.1} parent=5 // pred_region
      %s210 = ssub.s32 %s11, 1
      %p211 = scmp.lt.s32.totalorder %s20, 1
      %s212 = scalar_select %p211, %s20, 1
      %p213 = scmp.lt.s32.totalorder %s21, 0
      %s214 = scalar_select %p213, %s21, 0
      %s215 = sadd.s32 %s214, %s212
      %s216 = smul.addr %s215, 2
      %s217 = scalar_lea.vmem %s0, %s216
      %p218 = pneg %p51
      %p219 = pneg %p48
      %p220 = pneg %p72
      %p221 = pneg %p69
      %p222 = pneg %p93
      %p223 = pneg %p90
      %p224 = pneg %p114
      %p225 = pneg %p111
      %p226 = pneg %p135
      %p227 = pneg %p132
      %p228 = pneg %p163
      %p229 = pneg %p160
      %p230 = scmp.lt.s32.totalorder %s20, 1
      %s231 = scalar_select %p230, %s20, 1
      %p232 = scmp.lt.s32.totalorder %s21, 0
      %s233 = scalar_select %p232, %s21, 0
      %s234 = sadd.s32 %s233, %s231
      %s235 = smul.addr %s234, 4
      %s236 = scalar_lea.vmem %s5, %s235
      %p237 = scmp.lt.s32.totalorder %s20, 1
      %s238 = scalar_select %p237, %s20, 1
      %p239 = scmp.lt.s32.totalorder %s21, 0
      %s240 = scalar_select %p239, %s21, 0
      %s241 = sadd.s32 %s240, %s238
      %s242 = smul.addr %s241, 2
      %s243 = scalar_lea.vmem %s0, %s242
      %p244 = scmp.lt.s32.totalorder %s20, 1
      %s245 = scalar_select %p244, %s20, 1
      %p246 = scmp.lt.s32.totalorder %s21, 0
      %s247 = scalar_select %p246, %s21, 0
      %s248 = sadd.s32 %s247, %s245
      %s249 = smul.addr %s248, 4
      %s250 = scalar_lea.vmem %s5, %s249
      %v252 = vld [vmem:[%s1] sm:$0xf]
      %v253 = vld [vmem:[%s1 + $0x4] sm:$0xf]
      %v254 = vld [vmem:[%s1 + $0x8] sm:$0xf]
      %v255 = vld [vmem:[%s1 + $0xc] sm:$0xf]
      %v256 = vld [vmem:[%s2] sm:$0xff]
      %v257 = vld [vmem:[%s2 + $0x8] sm:$0xff]
      %v258 = vld [vmem:[%s2 + $0x10] sm:$0xff]
      %v259 = vld [vmem:[%s2 + $0x18] sm:$0xff]
      %v260 = vld [vmem:[%s3] sm:$0x3]
      %v261 = vld [vmem:[%s4] sm:$0x7]
      %v262 = vld [vmem:[%s243] sm:$0x3]
      %264 = vset.pattern.permute.xlu0 0
      %265 = vperm.xlu0 %264, %v256
      %v266 = vpop.permute.xlu0 %265
      %269 = vset.pattern.permute.xlu0 0
      %270 = vperm.xlu0 %269, %v257
      %v271 = vpop.permute.xlu0 %270
      %274 = vset.pattern.permute.xlu0 0
      %275 = vperm.xlu0 %274, %v258
      %v276 = vpop.permute.xlu0 %275
      %279 = vset.pattern.permute.xlu0 0
      %280 = vperm.xlu0 %279, %v259
      %v281 = vpop.permute.xlu0 %280
      %v287 = vunpack.c.l.b16 %v252
      %v288 = vunpack.c.l.b16 %v253
      %v289 = vunpack.c.l.b16 %v254
      %v290 = vunpack.c.l.b16 %v255
      %v291 = vpack.c.b16 %v288, %v287
      %v292 = vpack.c.b16 %v290, %v289
      %vm293 = vcmask 31744
      %v295 = vsel %vm293, %v291, 0
      %v298 = vsel %vm293, %v292, 0
      %vm300 = vcmask 1041408
      %v302 = vsel %vm300, %v262, 0
      %304 = vmatpush.bf16.msra.mxu0 0
      %305 = vmatpush.bf16.msra.mxu0 0
      %306 = vmatpush.bf16.msra.mxu0 0
      %307 = vmatpush.bf16.msra.mxu0 0
      %308 = vmatpush.bf16.msra.mxu0 0
      %309 = vmatpush.bf16.msra.mxu0 0
      %310 = vmatpush.bf16.msra.mxu0 0
      %311 = vmatpush.bf16.msra.mxu0 %v302
      %312 = vmatmul.bf16.gmra.mxu0 %v295
      %v313 = vpop.f32.mrf.mxu0
      %v314 = vadd.f32 %v266, %v313
      %v315 = vpop.f32.mrf.mxu0
      %v316 = vadd.f32 %v271, %v315
      %317 = vmatmul.bf16.gmra.mxu0 %v298
      %v318 = vpop.f32.mrf.mxu0
      %v319 = vadd.f32 %v276, %v318
      %v320 = vpop.f32.mrf.mxu0
      %v321 = vadd.f32 %v281, %v320
      %322 = vdwg.mxu0
      %v323 = vmax.f32 %v314, 0.0
      %v324 = vmax.f32 %v316, 0.0
      %v325 = vmax.f32 %v319, 0.0
      %v326 = vmax.f32 %v321, 0.0
      %v327 = vpack.c.bf16 %v324, %v323
      %v328 = vpack.c.bf16 %v326, %v325
      %330 = vset.pattern.permute.xlu0 0
      %331 = vperm.xlu0 %330, %v261
      %v332 = vpop.permute.xlu0 %331
      %vm334 = vcmask 261120
      %v336 = vsel %vm334, %v260, 0
      %338 = vmatpush.bf16.msra.mxu0 0
      %339 = vmatpush.bf16.msra.mxu0 0
      %340 = vmatpush.bf16.msra.mxu0 0
      %341 = vmatpush.bf16.msra.mxu0 0
      %342 = vmatpush.bf16.msra.mxu0 0
      %343 = vmatpush.bf16.msra.mxu0 0
      %344 = vmatpush.bf16.msra.mxu0 %v328
      %345 = vmatpush.bf16.msra.mxu0 %v327
      %346 = vmatmul.bf16.gmra.mxu0 %v336
      %v347 = vpop.f32.mrf.mxu0
      %v348 = vadd.f32 %v332, %v347
      %v349 = vpop.f32.mrf.mxu0
      %350 = vdwg.mxu0
      %351 = vst [vmem:[%s250] sm:$0x7] %v348
      %p352 = scmp.lt.s32.totalorder %s20, 1
      %s353 = scalar_select %p352, %s20, 1
      %p354 = scmp.lt.s32.totalorder %s21, 0
      %s355 = scalar_select %p354, %s21, 0
      %s356 = sadd.s32 %s355, %s353
      %s357 = smul.addr %s356, 4
      %s358 = scalar_lea.vmem %s5, %s357
      // Predicated region
      $region41: #{_mlp_time_major.1} parent=39 // pred_check
        %p359 = pneg %p160
      $region42: #{_mlp_time_major.1} parent=39 // pred_check_branch
        %361 = sbr.rel (%p359) target = $region44
      $region43: #{_mlp_time_major.1} parent=39 // pred_region
        _
      $region44: #{_mlp_time_major.1} parent=39 // pred_fallthru
        _
    $region40: #{_mlp_time_major.1} parent=5 // pred_fallthru
      _
    %p362 = scmp.le.s32.totalorder 2, %s11
    // Predicated region
    $region45: #{_mlp_time_major.1} parent=5 // pred_check
      %p363 = pneg %p362
    $region46: #{_mlp_time_major.1} parent=5 // pred_check_branch
      %365 = sbr.rel (%p363) target = $region48
    $region47: #{_mlp_time_major.1} parent=5 // pred_region
      %s366 = ssub.s32 %s11, 2
      // Predicated region
      $region49: #{_mlp_time_major.1} parent=47 // pred_check
        %p367 = pneg %p166
      $region50: #{_mlp_time_major.1} parent=47 // pred_check_branch
        %369 = sbr.rel (%p367) target = $region52
      $region51: #{_mlp_time_major.1} parent=47 // pred_region
        %p370 = scmp.lt.s32.totalorder %s22, 1
        %s371 = scalar_select %p370, %s22, 1
        %p372 = scmp.lt.s32.totalorder %s23, 0
        %s373 = scalar_select %p372, %s23, 0
        %s374 = sadd.s32 %s373, %s371
        %s375 = smul.addr %s374, 4
        %s376 = scalar_lea.vmem %s5, %s375
      $region52: #{_mlp_time_major.1} parent=47 // pred_fallthru
        _
    $region48: #{_mlp_time_major.1} parent=5 // pred_fallthru
      _
  $region6: #{_mlp_time_major.1} parent=0 // loop_footer
    %s15 = sadd.s32 1, %s11
  $region7: #{_mlp_time_major.1} parent=0 // loop_footer_branch
    %10 = sbr.rel target = $region3
  $region8: #{_mlp_time_major.1} parent=0 // loop_exit
    _

// kernel: _mlp_time_major.1
$region0: #{_mlp_time_major.1}
  #allocation0 [shape = 'u32[]', space=smem, size = 0x4, offset = 0x4, fixed_abs, tag = 'smem constant byte address 0x4 - core index']
  #allocation1 [shape = 'u32[72,128]{1,0:T(1,128)}', space=vmem, size = 0x9000, scoped, tag = 'internal scratch']
  %s0 = inlined_call_operand.vmem [shape: bf16[2,4,128], index: 0, kind: input, shape index: {}]
  %s1 = inlined_call_operand.vmem [shape: bf16[32,4], index: 1, kind: input, shape index: {}]
  %s2 = inlined_call_operand.vmem [shape: f32[32,1], index: 2, kind: input, shape index: {}]
  %s3 = inlined_call_operand.vmem [shape: bf16[3,32], index: 3, kind: input, shape index: {}]
  %s4 = inlined_call_operand.vmem [shape: f32[3,1], index: 4, kind: input, shape index: {}]
  %s5 = inlined_call_operand.vmem [shape: f32[2,3,128], index: 5, kind: output, shape index: {}]
  %s6 = sld [smem:[#allocation0]]
  $region53: #{_mlp_time_major.1} parent=0
    _
  %s8 = ssub.s32 1, %s6
  %s9 = scalar_select 0, %s8, %s6
  loop: start=0, step=1, limit=4
  $region2: #{_mlp_time_major.1} parent=0 // loop_pre_header
    _
  $region3: #{_mlp_time_major.1} parent=0 // loop_header
    %s11 = sphi 0, %s15
    %p12 = scmp.ge.s32.totalorder %s11, 4
    %s18 = sphi 0, %s30
    %s19 = sphi 0, %s26
    %s20 = sphi 0, %s18
    %s21 = sphi 0, %s19
    %s22 = sphi 0, %s20
    %s23 = sphi 0, %s21
    %s35 = sphi 0, %s37
    %s38 = sphi 0, %s35
    %s39 = sphi 0, %s38
    %s55 = sphi 0, %s39
    %s59 = sphi 0, %s59
    %s61 = sphi 0, %s59
    %s62 = sphi 0, %s61
    %s76 = sphi 0, %s62
    %s80 = sphi 0, %s80
    %s82 = sphi 0, %s80
    %s83 = sphi 0, %s82
    %s97 = sphi 0, %s83
    %s101 = sphi 0, %s101
    %s103 = sphi 0, %s101
    %s104 = sphi 0, %s103
    %s118 = sphi 0, %s104
    %s122 = sphi 0, %s122
    %s124 = sphi 0, %s122
    %s125 = sphi 0, %s124
    %s139 = sphi 0, %s125
    %s147 = sphi 0, %s149
    %s150 = sphi 0, %s147
    %s151 = sphi 0, %s150
    %s167 = sphi 0, %s151
  $region4: #{_mlp_time_major.1} parent=0 // loop_header_branch
    %14 = sbr.rel (%p12) target = $region8
  $region5: #{_mlp_time_major.1} parent=0 // loop_body
    %s16 = ssub.s32 %s11, 1
    %s17 = ssub.s32 %s11, 2
    %s24 = sadd.s32 1, %s19
    %p25 = scmp.ge.s32.totalorder %s24, 1
    %s26 = scalar_select %p25, 0, %s24
    %s27 = sadd.s32 1, %s18
    %s28 = scalar_select %p25, %s27, %s18
    %p29 = scmp.ge.s32.totalorder %s28, 2
    %s30 = scalar_select %p29, 0, %s28
    %s31 = ssub.s32 %s18, %s30
    %s32 = ssub.s32 %s19, %s26
    %s33 = sor.u32 %s31, %s32
    %p34 = scmp.eq.s32.totalorder %s33, 0
    %s36 = sadd.s32 %s35, 1
    %s37 = scalar_select %p34, %s35, %s36
    %p40 = pneg %p34
    %p41 = scmp.eq.s32.totalorder %s11, 1
    %p42 = por %p40, %p41
    %p43 = scmp.ne.s32.totalorder %s35, %s38
    %p44 = scmp.eq.s32.totalorder %s11, 0
    %p45 = por %p43, %p44
    %p46 = scmp.ne.s32.totalorder %s35, %s38
    %p47 = scmp.eq.s32.totalorder %s16, 1
    %p48 = por %p46, %p47
    %p49 = scmp.ne.s32.totalorder %s38, %s39
    %p50 = scmp.eq.s32.totalorder %s16, 0
    %p51 = por %p49, %p50
    %p52 = scmp.ne.s32.totalorder %s38, %s39
    %p53 = scmp.eq.s32.totalorder %s17, 1
    %p54 = por %p52, %p53
    %p56 = scmp.ne.s32.totalorder %s39, %s55
    %p57 = scmp.eq.s32.totalorder %s17, 0
    %p58 = por %p56, %p57
    %s60 = sadd.s32 %s59, 1
    %p63 = scmp.eq.s32.totalorder %s11, 1
    %p64 = scmp.ne.s32.totalorder %s59, %s61
    %p65 = scmp.eq.s32.totalorder %s11, 0
    %p66 = por %p64, %p65
    %p67 = scmp.ne.s32.totalorder %s59, %s61
    %p68 = scmp.eq.s32.totalorder %s16, 1
    %p69 = por %p67, %p68
    %p70 = scmp.ne.s32.totalorder %s61, %s62
    %p71 = scmp.eq.s32.totalorder %s16, 0
    %p72 = por %p70, %p71
    %p73 = scmp.ne.s32.totalorder %s61, %s62
    %p74 = scmp.eq.s32.totalorder %s17, 1
    %p75 = por %p73, %p74
    %p77 = scmp.ne.s32.totalorder %s62, %s76
    %p78 = scmp.eq.s32.totalorder %s17, 0
    %p79 = por %p77, %p78
    %s81 = sadd.s32 %s80, 1
    %p84 = scmp.eq.s32.totalorder %s11, 1
    %p85 = scmp.ne.s32.totalorder %s80, %s82
    %p86 = scmp.eq.s32.totalorder %s11, 0
    %p87 = por %p85, %p86
    %p88 = scmp.ne.s32.totalorder %s80, %s82
    %p89 = scmp.eq.s32.totalorder %s16, 1
    %p90 = por %p88, %p89
    %p91 = scmp.ne.s32.totalorder %s82, %s83
    %p92 = scmp.eq.s32.totalorder %s16, 0
    %p93 = por %p91, %p92
    %p94 = scmp.ne.s32.totalorder %s82, %s83
    %p95 = scmp.eq.s32.totalorder %s17, 1
    %p96 = por %p94, %p95
    %p98 = scmp.ne.s32.totalorder %s83, %s97
    %p99 = scmp.eq.s32.totalorder %s17, 0
    %p100 = por %p98, %p99
    %s102 = sadd.s32 %s101, 1
    %p105 = scmp.eq.s32.totalorder %s11, 1
    %p106 = scmp.ne.s32.totalorder %s101, %s103
    %p107 = scmp.eq.s32.totalorder %s11, 0
    %p108 = por %p106, %p107
    %p109 = scmp.ne.s32.totalorder %s101, %s103
    %p110 = scmp.eq.s32.totalorder %s16, 1
    %p111 = por %p109, %p110
    %p112 = scmp.ne.s32.totalorder %s103, %s104
    %p113 = scmp.eq.s32.totalorder %s16, 0
    %p114 = por %p112, %p113
    %p115 = scmp.ne.s32.totalorder %s103, %s104
    %p116 = scmp.eq.s32.totalorder %s17, 1
    %p117 = por %p115, %p116
    %p119 = scmp.ne.s32.totalorder %s104, %s118
    %p120 = scmp.eq.s32.totalorder %s17, 0
    %p121 = por %p119, %p120
    %s123 = sadd.s32 %s122, 1
    %p126 = scmp.eq.s32.totalorder %s11, 1
    %p127 = scmp.ne.s32.totalorder %s122, %s124
    %p128 = scmp.eq.s32.totalorder %s11, 0
    %p129 = por %p127, %p128
    %p130 = scmp.ne.s32.totalorder %s122, %s124
    %p131 = scmp.eq.s32.totalorder %s16, 1
    %p132 = por %p130, %p131
    %p133 = scmp.ne.s32.totalorder %s124, %s125
    %p134 = scmp.eq.s32.totalorder %s16, 0
    %p135 = por %p133, %p134
    %p136 = scmp.ne.s32.totalorder %s124, %s125
    %p137 = scmp.eq.s32.totalorder %s17, 1
    %p138 = por %p136, %p137
    %p140 = scmp.ne.s32.totalorder %s125, %s139
    %p141 = scmp.eq.s32.totalorder %s17, 0
    %p142 = por %p140, %p141
    %s143 = ssub.s32 %s18, %s30
    %s144 = ssub.s32 %s19, %s26
    %s145 = sor.u32 %s143, %s144
    %p146 = scmp.eq.s32.totalorder %s145, 0
    %s148 = sadd.s32 %s147, 1
    %s149 = scalar_select %p146, %s147, %s148
    %p152 = pneg %p146
    %p153 = scmp.eq.s32.totalorder %s11, 1
    %p154 = por %p152, %p153
    %p155 = scmp.ne.s32.totalorder %s147, %s150
    %p156 = scmp.eq.s32.totalorder %s11, 0
    %p157 = por %p155, %p156
    %p158 = scmp.ne.s32.totalorder %s147, %s150
    %p159 = scmp.eq.s32.totalorder %s16, 1
    %p160 = por %p158, %p159
    %p161 = scmp.ne.s32.totalorder %s150, %s151
    %p162 = scmp.eq.s32.totalorder %s16, 0
    %p163 = por %p161, %p162
    %p164 = scmp.ne.s32.totalorder %s150, %s151
    %p165 = scmp.eq.s32.totalorder %s17, 1
    %p166 = por %p164, %p165
    %p168 = scmp.ne.s32.totalorder %s151, %s167
    %p169 = scmp.eq.s32.totalorder %s17, 0
    %p170 = por %p168, %p169
    %p171 = scmp.le.s32.totalorder 1, %s11
    %p172 = scmp.lt.s32.totalorder %s11, 3
    %p173 = pnand %p171, %p172
    %p174 = pneg %p173
    // Predicated region
    $region9: #{_mlp_time_major.1} parent=5 // pred_check
      _
    $region10: #{_mlp_time_major.1} parent=5 // pred_check_branch
      %176 = sbr.rel (%p173) target = $region12
    $region11: #{_mlp_time_major.1} parent=5 // pred_region
      %s177 = ssub.s32 %s11, 1
      // Predicated region
      $region13: #{_mlp_time_major.1} parent=11 // pred_check
        %p178 = pneg %p72
      $region14: #{_mlp_time_major.1} parent=11 // pred_check_branch
        %180 = sbr.rel (%p178) target = $region16
      $region15: #{_mlp_time_major.1} parent=11 // pred_region
        _
      $region16: #{_mlp_time_major.1} parent=11 // pred_fallthru
        _
      // Predicated region
      $region17: #{_mlp_time_major.1} parent=11 // pred_check
        %p181 = pneg %p93
      $region18: #{_mlp_time_major.1} parent=11 // pred_check_branch
        %183 = sbr.rel (%p181) target = $region20
      $region19: #{_mlp_time_major.1} parent=11 // pred_region
        _
      $region20: #{_mlp_time_major.1} parent=11 // pred_fallthru
        _
      // Predicated region
      $region21: #{_mlp_time_major.1} parent=11 // pred_check
        %p184 = pneg %p114
      $region22: #{_mlp_time_major.1} parent=11 // pred_check_branch
        %186 = sbr.rel (%p184) target = $region24
      $region23: #{_mlp_time_major.1} parent=11 // pred_region
        _
      $region24: #{_mlp_time_major.1} parent=11 // pred_fallthru
        _
      // Predicated region
      $region25: #{_mlp_time_major.1} parent=11 // pred_check
        %p187 = pneg %p135
      $region26: #{_mlp_time_major.1} parent=11 // pred_check_branch
        %189 = sbr.rel (%p187) target = $region28
      $region27: #{_mlp_time_major.1} parent=11 // pred_region
        _
      $region28: #{_mlp_time_major.1} parent=11 // pred_fallthru
        _
    $region12: #{_mlp_time_major.1} parent=5 // pred_fallthru
      _
    %p190 = scmp.lt.s32.totalorder %s11, 2
    // Predicated region
    $region29: #{_mlp_time_major.1} parent=5 // pred_check
      %p191 = pneg %p190
    $region30: #{_mlp_time_major.1} parent=5 // pred_check_branch
      %193 = sbr.rel (%p191) target = $region32
    $region31: #{_mlp_time_major.1} parent=5 // pred_region
      // Predicated region
      $region33: #{_mlp_time_major.1} parent=31 // pred_check
        %p194 = pneg %p45
      $region34: #{_mlp_time_major.1} parent=31 // pred_check_branch
        %196 = sbr.rel (%p194) target = $region36
      $region35: #{_mlp_time_major.1} parent=31 // pred_region
        %p197 = scmp.lt.s32.totalorder %s18, 1
        %s198 = scalar_select %p197, %s18, 1
        %p199 = scmp.lt.s32.totalorder %s19, 0
        %s200 = scalar_select %p199, %s19, 0
        %s201 = sadd.s32 %s200, %s198
        %s202 = smul.addr %s201, 2
        %s203 = scalar_lea.vmem %s0, %s202
      $region36: #{_mlp_time_major.1} parent=31 // pred_fallthru
        _
    $region32: #{_mlp_time_major.1} parent=5 // pred_fallthru
      _
    %p204 = scmp.le.s32.totalorder 1, %s11
    %p205 = scmp.lt.s32.totalorder %s11, 3
    %p206 = pnand %p204, %p205
    %p207 = pneg %p206
    // Predicated region
    $region37: #{_mlp_time_major.1} parent=5 // pred_check
      _
    $region38: #{_mlp_time_major.1} parent=5 // pred_check_branch
      %209 = sbr.rel (%p206) target = $region40
    $region39: #{_mlp_time_major.1} parent=5 // pred_region
      %s210 = ssub.s32 %s11, 1
      %p211 = scmp.lt.s32.totalorder %s20, 1
      %s212 = scalar_select %p211, %s20, 1
      %p213 = scmp.lt.s32.totalorder %s21, 0
      %s214 = scalar_select %p213, %s21, 0
      %s215 = sadd.s32 %s214, %s212
      %s216 = smul.addr %s215, 2
      %s217 = scalar_lea.vmem %s0, %s216
      %p218 = pneg %p51
      %p219 = pneg %p48
      %p220 = pneg %p72
      %p221 = pneg %p69
      %p222 = pneg %p93
      %p223 = pneg %p90
      %p224 = pneg %p114
      %p225 = pneg %p111
      %p226 = pneg %p135
      %p227 = pneg %p132
      %p228 = pneg %p163
      %p229 = pneg %p160
      %p230 = scmp.lt.s32.totalorder %s20, 1
      %s231 = scalar_select %p230, %s20, 1
      %p232 = scmp.lt.s32.totalorder %s21, 0
      %s233 = scalar_select %p232, %s21, 0
      %s234 = sadd.s32 %s233, %s231
      %s235 = smul.addr %s234, 4
      %s236 = scalar_lea.vmem %s5, %s235
      %p237 = scmp.lt.s32.totalorder %s20, 1
      %s238 = scalar_select %p237, %s20, 1
      %p239 = scmp.lt.s32.totalorder %s21, 0
      %s240 = scalar_select %p239, %s21, 0
      %s241 = sadd.s32 %s240, %s238
      %s242 = smul.addr %s241, 2
      %s243 = scalar_lea.vmem %s0, %s242
      %p244 = scmp.lt.s32.totalorder %s20, 1
      %s245 = scalar_select %p244, %s20, 1
      %p246 = scmp.lt.s32.totalorder %s21, 0
      %s247 = scalar_select %p246, %s21, 0
      %s248 = sadd.s32 %s247, %s245
      %s249 = smul.addr %s248, 4
      %s250 = scalar_lea.vmem %s5, %s249
      %v252 = vld [vmem:[%s1] sm:$0xf]
      %v253 = vld [vmem:[%s1 + $0x4] sm:$0xf]
      %v254 = vld [vmem:[%s1 + $0x8] sm:$0xf]
      %v255 = vld [vmem:[%s1 + $0xc] sm:$0xf]
      %v256 = vld [vmem:[%s2] sm:$0xff]
      %v257 = vld [vmem:[%s2 + $0x8] sm:$0xff]
      %v258 = vld [vmem:[%s2 + $0x10] sm:$0xff]
      %v259 = vld [vmem:[%s2 + $0x18] sm:$0xff]
      %v260 = vld [vmem:[%s3] sm:$0x3]
      %v261 = vld [vmem:[%s4] sm:$0x7]
      %v262 = vld [vmem:[%s243] sm:$0x3]
      %264 = vset.pattern.permute.xlu0 0
      %265 = vperm.xlu0 %264, %v256
      %v266 = vpop.permute.xlu0 %265
      %269 = vset.pattern.permute.xlu0 0
      %270 = vperm.xlu0 %269, %v257
      %v271 = vpop.permute.xlu0 %270
      %274 = vset.pattern.permute.xlu0 0
      %275 = vperm.xlu0 %274, %v258
      %v276 = vpop.permute.xlu0 %275
      %279 = vset.pattern.permute.xlu0 0
      %280 = vperm.xlu0 %279, %v259
      %v281 = vpop.permute.xlu0 %280
      %v287 = vunpack.c.l.b16 %v252
      %v288 = vunpack.c.l.b16 %v253
      %v289 = vunpack.c.l.b16 %v254
      %v290 = vunpack.c.l.b16 %v255
      %v291 = vpack.c.b16 %v288, %v287
      %v292 = vpack.c.b16 %v290, %v289
      %vm293 = vcmask 31744
      %v295 = vsel %vm293, %v291, 0
      %v298 = vsel %vm293, %v292, 0
      %vm300 = vcmask 1041408
      %v302 = vsel %vm300, %v262, 0
      %304 = vmatpush.bf16.msra.mxu0 0
      %305 = vmatpush.bf16.msra.mxu0 0
      %306 = vmatpush.bf16.msra.mxu0 0
      %307 = vmatpush.bf16.msra.mxu0 0
      %308 = vmatpush.bf16.msra.mxu0 0
      %309 = vmatpush.bf16.msra.mxu0 0
      %310 = vmatpush.bf16.msra.mxu0 0
      %311 = vmatpush.bf16.msra.mxu0 %v302
      %312 = vmatmul.bf16.gmra.mxu0 %v295
      %v313 = vpop.f32.mrf.mxu0
      %v314 = vadd.f32 %v266, %v313
      %v315 = vpop.f32.mrf.mxu0
      %v316 = vadd.f32 %v271, %v315
      %317 = vmatmul.bf16.gmra.mxu0 %v298
      %v318 = vpop.f32.mrf.mxu0
      %v319 = vadd.f32 %v276, %v318
      %v320 = vpop.f32.mrf.mxu0
      %v321 = vadd.f32 %v281, %v320
      %322 = vdwg.mxu0
      %v323 = vmax.f32 %v314, 0.0
      %v324 = vmax.f32 %v316, 0.0
      %v325 = vmax.f32 %v319, 0.0
      %v326 = vmax.f32 %v321, 0.0
      %v327 = vpack.c.bf16 %v324, %v323
      %v328 = vpack.c.bf16 %v326, %v325
      %330 = vset.pattern.permute.xlu0 0
      %331 = vperm.xlu0 %330, %v261
      %v332 = vpop.permute.xlu0 %331
      %vm334 = vcmask 261120
      %v336 = vsel %vm334, %v260, 0
      %338 = vmatpush.bf16.msra.mxu0 0
      %339 = vmatpush.bf16.msra.mxu0 0
      %340 = vmatpush.bf16.msra.mxu0 0
      %341 = vmatpush.bf16.msra.mxu0 0
      %342 = vmatpush.bf16.msra.mxu0 0
      %343 = vmatpush.bf16.msra.mxu0 0
      %344 = vmatpush.bf16.msra.mxu0 %v328
      %345 = vmatpush.bf16.msra.mxu0 %v327
      %346 = vmatmul.bf16.gmra.mxu0 %v336
      %v347 = vpop.f32.mrf.mxu0
      %v348 = vadd.f32 %v332, %v347
      %v349 = vpop.f32.mrf.mxu0
      %350 = vdwg.mxu0
      %351 = vst [vmem:[%s250] sm:$0x7] %v348
      %p352 = scmp.lt.s32.totalorder %s20, 1
      %s353 = scalar_select %p352, %s20, 1
      %p354 = scmp.lt.s32.totalorder %s21, 0
      %s355 = scalar_select %p354, %s21, 0
      %s356 = sadd.s32 %s355, %s353
      %s357 = smul.addr %s356, 4
      %s358 = scalar_lea.vmem %s5, %s357
      // Predicated region
      $region41: #{_mlp_time_major.1} parent=39 // pred_check
        %p359 = pneg %p160
      $region42: #{_mlp_time_major.1} parent=39 // pred_check_branch
        %361 = sbr.rel (%p359) target = $region44
      $region43: #{_mlp_time_major.1} parent=39 // pred_region
        _
      $region44: #{_mlp_time_major.1} parent=39 // pred_fallthru
        _
    $region40: #{_mlp_time_major.1} parent=5 // pred_fallthru
      _
    %p362 = scmp.le.s32.totalorder 2, %s11
    // Predicated region
    $region45: #{_mlp_time_major.1} parent=5 // pred_check
      %p363 = pneg %p362
    $region46: #{_mlp_time_major.1} parent=5 // pred_check_branch
      %365 = sbr.rel (%p363) target = $region48
    $region47: #{_mlp_time_major.1} parent=5 // pred_region
      %s366 = ssub.s32 %s11, 2
      // Predicated region
      $region49: #{_mlp_time_major.1} parent=47 // pred_check
        %p367 = pneg %p166
      $region50: #{_mlp_time_major.1} parent=47 // pred_check_branch
        %369 = sbr.rel (%p367) target = $region52
      $region51: #{_mlp_time_major.1} parent=47 // pred_region
        %p370 = scmp.lt.s32.totalorder %s22, 1
        %s371 = scalar_select %p370, %s22, 1
        %p372 = scmp.lt.s32.totalorder %s23, 0
        %s373 = scalar_select %p372, %s23, 0
        %s374 = sadd.s32 %s373, %s371
        %s375 = smul.addr %s374, 4
        %s376 = scalar_lea.vmem %s5, %s375
      $region52: #{_mlp_time_major.1} parent=47 // pred_fallthru
        _
    $region48: #{_mlp_time_major.1} parent=5 // pred_fallthru
      _
  $region6: #{_mlp_time_major.1} parent=0 // loop_footer
    %s15 = sadd.s32 1, %s11
  $region7: #{_mlp_time_major.1} parent=0 // loop_footer_branch
    %10 = sbr.rel target = $region3
  $region8: #{_mlp_time_major.1} parent=0 // loop_exit
    _

</llo_original>
